<compile_context>
chip_gen: v6e
topology: v6e:2x2x1
jax: 0.10.0
libtpu: 0.0.40
codegen_flags: <defaults>
</compile_context>

<pallas_src>
import jax
import jax.numpy as jnp
import numpy as np
from jax import lax
from jax.experimental import pallas as pl
from jax.experimental.pallas import tpu as pltpu


_ACC_W = 128                    # lane-accumulator width (one vreg lane group)
_CHUNK = 1024                   # lane chunk for streaming passes
_LANE_ACC_BYTES = 128 * 1024    # cap for the (b_tile, C, 128) f32 accumulator


def _make_eca_kernel(b_tile: int, C: int, HW: int, k_size: int):
    pad = (k_size - 1) // 2
    inv_hw = float(1.0 / HW)
    use_lane_acc = (HW >= _ACC_W) and (b_tile * C * _ACC_W * 4 <= _LANE_ACC_BYTES)

    def eca_kernel(w_ref, x_ref, o_ref, ppad_ref):
        # ---------- Pass 1: global average pool over the lane (HW) axis ----------
        if use_lane_acc:
            # Lane-wise partial sums keep the hot loop on the VALU; a single
            # cross-lane (XLU) reduce happens after the loop.
            n_full = HW // _ACC_W

            def add_chunk(acc, start):
                return acc + x_ref[:, :, pl.ds(start, _ACC_W)].astype(jnp.float32)

            acc = jnp.zeros((b_tile, C, _ACC_W), jnp.float32)
            if n_full <= 16:
                for i in range(n_full):                       # static unroll
                    acc = add_chunk(acc, i * _ACC_W)
            else:
                def body(i, a):
                    return add_chunk(a, pl.multiple_of(i * _ACC_W, _ACC_W))
                acc = lax.fori_loop(0, n_full, body, acc, unroll=4)
            total = jnp.sum(acc, axis=2)                      # (b_tile, C)
            tail = HW - n_full * _ACC_W
            if tail:
                total = total + jnp.sum(
                    x_ref[:, :, pl.ds(n_full * _ACC_W, tail)].astype(jnp.float32),
                    axis=2)
        else:
            total = jnp.zeros((b_tile, C), jnp.float32)
            start = 0
            while start < HW:                                 # static unroll
                size = min(_CHUNK, HW - start)
                total = total + jnp.sum(
                    x_ref[:, :, pl.ds(start, size)].astype(jnp.float32), axis=2)
                start += size
        p = total * inv_hw                                    # true mean (no pad bias)

        # ---------- k-tap Conv1d over channels (zero padded), then sigmoid ----------
        # The zero-padded pooled row lives in a tiny VMEM scratch; taps use static
        # slices, so no reliance on roll/concat lane-relayout semantics for any C.
        taps = [w_ref[j] for j in range(k_size)]              # SMEM scalar reads
        ppad_ref[...] = jnp.zeros((b_tile, C + 2 * pad), jnp.float32)
        ppad_ref[:, pad:pad + C] = p
        y = taps[0] * ppad_ref[:, 0:C]
        for j in range(1, k_size):
            y = y + taps[j] * ppad_ref[:, j:j + C]
        gate = jax.nn.sigmoid(y).astype(o_ref.dtype)          # (b_tile, C)
        gate_b = gate[:, :, None]                             # hoisted broadcast

        # ---------- Pass 2: stream the block again and scale (lane-dense) ----------
        start = 0
        while start < HW:                                     # static unroll
            size = min(_CHUNK, HW - start)
            o_ref[:, :, pl.ds(start, size)] = (
                x_ref[:, :, pl.ds(start, size)] * gate_b)
            start += size

    return eca_kernel


def _choose_b_tile(B: int, bytes_per_batch: int, target_bytes: int) -> int:
    """Freely chosen batch fuse (no divisor constraint); grid = cdiv(B, b_tile)."""
    b_tile = max(1, min(B, target_bytes // max(1, bytes_per_batch)))
    if B >= 2:
        # Keep at least two grid steps so the "parallel" batch axis can be split
        # across TensorCores on v7x; harmless on single-TC v5e/v6e.
        b_tile = min(b_tile, pl.cdiv(B, 2))
    return int(b_tile)


def eca_attention(x_nchw: jax.Array, conv_w: jax.Array) -> jax.Array:
    """x_nchw: (B, C, H, W); conv_w: (k,) (squeezed Conv1d(1, 1, k) weight)."""
    B, C, H, W = x_nchw.shape
    HW = H * W
    k_size = int(conv_w.shape[0])
    pad = (k_size - 1) // 2
    conv_w = conv_w.astype(jnp.float32)

    # No spatial padding / cropping: the reshape is free, and the (C, HW) block
    # dims equal the full array dims so the (8,128) rule is bypassed.
    x = x_nchw.reshape(B, C, HW)

    bytes_per_batch = C * HW * x.dtype.itemsize
    target_block_bytes = 4 << 20          # ~4 MiB blocks amortize the ~0.35us/step
    b_tile = _choose_b_tile(B, bytes_per_batch, target_block_bytes)
    num_blocks = pl.cdiv(B, b_tile)
    # TODO(synk): for very large per-batch activations (C*H*W*4 >> 8 MiB, e.g.
    # C=2048 at 56x56) add a second "arbitrary" grid axis over HW with a pooled
    # accumulator + a second scaling sweep so blocks stay small on v7x (64 MiB VMEM).

    block_bytes = b_tile * bytes_per_batch
    compiler_kwargs = dict(dimension_semantics=("parallel",))
    vmem_need = 4 * block_bytes + (2 << 20)    # in+out double-buffered + slack
    if vmem_need > (16 << 20):                 # above v5e's default scoped limit
        compiler_kwargs["vmem_limit_bytes"] = int(min(vmem_need, 64 << 20))

    kernel = _make_eca_kernel(b_tile, C, HW, k_size)

    out = pl.pallas_call(
        kernel,
        out_shape=jax.ShapeDtypeStruct((B, C, HW), x.dtype),
        grid_spec=pltpu.PrefetchScalarGridSpec(
            num_scalar_prefetch=0,
            grid=(num_blocks,),
            in_specs=[
                pl.BlockSpec(memory_space=pltpu.MemorySpace.SMEM),    # conv taps
                pl.BlockSpec((b_tile, C, HW), lambda b: (b, 0, 0)),   # x block
            ],
            out_specs=pl.BlockSpec((b_tile, C, HW), lambda b: (b, 0, 0)),
            scratch_shapes=[pltpu.VMEM((b_tile, C + 2 * pad), jnp.float32)],
        ),
        compiler_params=pltpu.CompilerParams(**compiler_kwargs),
    )(conv_w, x)

    return out.reshape(B, C, H, W)


def eca_reference(x_nchw: jax.Array, conv_w: jax.Array) -> jax.Array:
    """Plain-JAX reference mirroring the PyTorch module."""
    B, C, H, W = x_nchw.shape
    k = conv_w.shape[0]
    pad = (k - 1) // 2
    p = jnp.mean(x_nchw.astype(jnp.float32), axis=(2, 3))      # (B, C)
    p_pad = jnp.pad(p, ((0, 0), (pad, pad)))
    y = jnp.zeros_like(p)
    for j in range(k):
        y = y + conv_w[j] * p_pad[:, j:j + C]
    gate = jax.nn.sigmoid(y)                                    # (B, C)
    return (x_nchw * gate[:, :, None, None]).astype(x_nchw.dtype)


if __name__ == "__main__":
    key = jax.random.PRNGKey(0)

    # Cases cover: the basic shape, HW < 128, HW with a ragged lane tail,
    # C not a multiple of 128, k=5 taps, and an odd B (ragged last batch block).
    cases = [
        (2, 4, 16, 16, 3),
        (4, 64, 7, 7, 3),
        (2, 96, 14, 14, 5),
        (3, 32, 10, 10, 3),
    ]
    for idx, (B, C, H, W, k_size) in enumerate(cases):
        kx, kw = jax.random.split(jax.random.fold_in(key, idx))
        x = jax.random.normal(kx, (B, C, H, W), dtype=jnp.float32)
        # Deterministic Conv1d(1, 1, k, bias=False) weight, shape (1,1,k) -> (k,)
        bound = 1.0 / np.sqrt(k_size)
        conv_w = jax.random.uniform(kw, (k_size,), dtype=jnp.float32,
                                    minval=-bound, maxval=bound)

        out = jax.block_until_ready(eca_attention(x, conv_w))
        ref = eca_reference(x, conv_w)
        np.testing.assert_allclose(np.asarray(out), np.asarray(ref),
                                   rtol=1e-5, atol=1e-5)

    print("KERNEL_OK")
</pallas_src>

<mosaic_0001>
module attributes {stable_mosaic.version = 11 : i64} {
  func.func @eca_kernel(%arg0: i32, %arg1: memref<3xf32, #tpu.memory_space<smem>>, %arg2: memref<1x4x256xf32, #tpu.memory_space<vmem>>, %arg3: memref<1x4x256xf32, #tpu.memory_space<vmem>>, %arg4: memref<1x6xf32, #tpu.memory_space<vmem>>) attributes {dimension_semantics = [#tpu.dimension_semantics<parallel>], iteration_bounds = array<i64: 2>, scalar_prefetch = 0 : i64, scratch_operands = 1 : i64, tpu.core_type = #tpu.core_type<tc>, window_params = [{transform_indices = @transform_0, window_bounds = array<i64: 3>}, {transform_indices = @transform_1, window_bounds = array<i64: 1, 4, 256>}, {transform_indices = @transform_2, window_bounds = array<i64: 1, 4, 256>}]} {
    %cst = arith.constant 0.000000e+00 : f32
    %0 = vector.broadcast %cst : f32 to vector<1x4x128xf32>
    %c0 = arith.constant 0 : index
    %c0_0 = arith.constant 0 : index
    %c0_1 = arith.constant 0 : index
    %1 = vector.load %arg2[%c0, %c0_0, %c0_1] : memref<1x4x256xf32, #tpu.memory_space<vmem>>, vector<1x4x128xf32>
    %2 = arith.addf %0, %1 : vector<1x4x128xf32>
    %c0_2 = arith.constant 0 : index
    %c0_3 = arith.constant 0 : index
    %c128 = arith.constant 128 : index
    %3 = vector.load %arg2[%c0_2, %c0_3, %c128] : memref<1x4x256xf32, #tpu.memory_space<vmem>>, vector<1x4x128xf32>
    %4 = arith.addf %2, %3 : vector<1x4x128xf32>
    %cst_4 = arith.constant dense<0.000000e+00> : vector<1x4xf32>
    %5 = vector.multi_reduction <add>, %4, %cst_4 [2] : vector<1x4x128xf32> to vector<1x4xf32>
    %cst_5 = arith.constant 3.906250e-03 : f32
    %6 = vector.broadcast %cst_5 : f32 to vector<1x4xf32>
    %7 = arith.mulf %5, %6 : vector<1x4xf32>
    %c0_6 = arith.constant 0 : index
    %8 = memref.load %arg1[%c0_6] : memref<3xf32, #tpu.memory_space<smem>>
    %c1 = arith.constant 1 : index
    %9 = memref.load %arg1[%c1] : memref<3xf32, #tpu.memory_space<smem>>
    %c2 = arith.constant 2 : index
    %10 = memref.load %arg1[%c2] : memref<3xf32, #tpu.memory_space<smem>>
    %cst_7 = arith.constant 0.000000e+00 : f32
    %11 = vector.broadcast %cst_7 : f32 to vector<1x6xf32>
    %c0_8 = arith.constant 0 : index
    %c0_9 = arith.constant 0 : index
    %12 = vector.load %arg4[%c0_8, %c0_9] : memref<1x6xf32, #tpu.memory_space<vmem>>, vector<1x6xf32>
    tpu.vector_store %arg4[%c0_8, %c0_9], %11 {strides = array<i32>} : memref<1x6xf32, #tpu.memory_space<vmem>>, vector<1x6xf32>,
    %c0_10 = arith.constant 0 : index
    %c1_11 = arith.constant 1 : index
    %13 = vector.load %arg4[%c0_10, %c1_11] : memref<1x6xf32, #tpu.memory_space<vmem>>, vector<1x4xf32>
    tpu.vector_store %arg4[%c0_10, %c1_11], %7 {strides = array<i32>} : memref<1x6xf32, #tpu.memory_space<vmem>>, vector<1x4xf32>,
    %c0_12 = arith.constant 0 : index
    %c0_13 = arith.constant 0 : index
    %14 = vector.load %arg4[%c0_12, %c0_13] : memref<1x6xf32, #tpu.memory_space<vmem>>, vector<1x4xf32>
    %15 = vector.broadcast %8 : f32 to vector<1x4xf32>
    %16 = arith.mulf %15, %14 : vector<1x4xf32>
    %c0_14 = arith.constant 0 : index
    %c1_15 = arith.constant 1 : index
    %17 = vector.load %arg4[%c0_14, %c1_15] : memref<1x6xf32, #tpu.memory_space<vmem>>, vector<1x4xf32>
    %18 = vector.broadcast %9 : f32 to vector<1x4xf32>
    %19 = arith.mulf %18, %17 : vector<1x4xf32>
    %20 = arith.addf %16, %19 : vector<1x4xf32>
    %c0_16 = arith.constant 0 : index
    %c2_17 = arith.constant 2 : index
    %21 = vector.load %arg4[%c0_16, %c2_17] : memref<1x6xf32, #tpu.memory_space<vmem>>, vector<1x4xf32>
    %22 = vector.broadcast %10 : f32 to vector<1x4xf32>
    %23 = arith.mulf %22, %21 : vector<1x4xf32>
    %24 = arith.addf %20, %23 : vector<1x4xf32>
    %25 = arith.negf %24 : vector<1x4xf32>
    %26 = math.exp %25 : vector<1x4xf32>
    %cst_18 = arith.constant 1.000000e+00 : f32
    %27 = vector.broadcast %cst_18 : f32 to vector<1x4xf32>
    %28 = arith.addf %27, %26 : vector<1x4xf32>
    %29 = arith.divf %27, %28 : vector<1x4xf32>
    %30 = vector.shape_cast %29 : vector<1x4xf32> to vector<1x4x1xf32>
    %c0_19 = arith.constant 0 : index
    %c0_20 = arith.constant 0 : index
    %c0_21 = arith.constant 0 : index
    %31 = vector.load %arg2[%c0_19, %c0_20, %c0_21] : memref<1x4x256xf32, #tpu.memory_space<vmem>>, vector<1x4x256xf32>
    %32 = vector.broadcast %30 : vector<1x4x1xf32> to vector<1x4x256xf32>
    %33 = arith.mulf %31, %32 : vector<1x4x256xf32>
    %c0_22 = arith.constant 0 : index
    %c0_23 = arith.constant 0 : index
    %c0_24 = arith.constant 0 : index
    %34 = vector.load %arg3[%c0_22, %c0_23, %c0_24] : memref<1x4x256xf32, #tpu.memory_space<vmem>>, vector<1x4x256xf32>
    tpu.vector_store %arg3[%c0_22, %c0_23, %c0_24], %33 {strides = array<i32>} : memref<1x4x256xf32, #tpu.memory_space<vmem>>, vector<1x4x256xf32>,
    return
  }
  func.func @transform_0(%arg0: i32) -> i32 {
    %c0_i32 = arith.constant 0 : i32
    %c0_i32_0 = arith.constant 0 : i32
    return %c0_i32 : i32
  }
  func.func @transform_1(%arg0: i32) -> (i32, i32, i32) {
    %c0_i32 = arith.constant 0 : i32
    %c0_i32_0 = arith.constant 0 : i32
    %c0_i32_1 = arith.constant 0 : i32
    return %arg0, %c0_i32, %c0_i32_0 : i32, i32, i32
  }
  func.func @transform_2(%arg0: i32) -> (i32, i32, i32) {
    %c0_i32 = arith.constant 0 : i32
    %c0_i32_0 = arith.constant 0 : i32
    %c0_i32_1 = arith.constant 0 : i32
    return %arg0, %c0_i32, %c0_i32_0 : i32, i32, i32
  }
}

</mosaic_0001>

<llo_original>
// kernel: tpu_custom_call.1
$region0: #{tpu_custom_call.1}
  #allocation0 [shape = 'u32[]', space=smem, size = 0x4, offset = 0x4, fixed_abs, tag = 'smem constant byte address 0x4 - core index']
  #allocation1 [shape = 'u32[144,128]{1,0:T(1,128)}', space=vmem, size = 0x12000, scoped, tag = 'internal scratch']
  #allocation2 [shape = 'f32[1,6]{1,0:T(1,128)}', space=vmem, size = 0x200, scoped, tag = 'scratch operand']
  %s0 = inlined_call_operand.hbm [shape: f32[3], index: 0, kind: input, shape index: {}]
  %s1 = inlined_call_operand.hbm [shape: f32[2,4,256], index: 1, kind: input, shape index: {}]
  %s2 = inlined_call_operand.hbm [shape: f32[2,4,256], index: 2, kind: output, shape index: {}]
  %s3 = sld [smem:[#allocation0]]
  $region49: #{tpu_custom_call.1} parent=0
    _
  %s5 = ssub.s32 1, %s3
  %s6 = scalar_select 0, %s5, %s3
  $region1: #{tpu_custom_call.1} parent=0
    #allocation3 [shape = 'u8[512]{0}', space=smem, size = 0x200, scoped, tag = 'input window, operand 0, single buffered']
    #allocation4 [shape = 's32[2]{0}', space=sflag, size = 0x8, scoped, tag = 'scoped memory for tpu_custom_call.1']
    #allocation5 [shape = 's32[2]{0}', space=sflag, size = 0x8, scoped, tag = 'scoped memory for tpu_custom_call.1']
    #allocation6 [shape = 's32[2]{0}', space=sflag, size = 0x8, scoped, tag = 'scoped memory for tpu_custom_call.1']
    #allocation7 [shape = 'u8[8192]{0}', space=vmem, size = 0x2000, scoped, tag = 'input window, operand 1']
    #allocation8 [shape = 'u8[8192]{0}', space=vmem, size = 0x2000, scoped, tag = 'output window, operand 0']
    %7 = vsyncpa [#allocation6], 0
    %8 = vsyncpa [#allocation4], 0
    %s9 = scalar_lea.sflag [#allocation4], 1
    %10 = vsyncpa %s9, 0
    %11 = vsyncpa [#allocation5], 0
    %s12 = scalar_lea.sflag [#allocation5], 1
    %13 = vsyncpa %s12, 0
    loop: start=0, step=1, limit=4
    $region2: #{tpu_custom_call.1} parent=1 // loop_pre_header
      _
    $region3: #{tpu_custom_call.1} parent=1 // loop_header
      %s15 = sphi 0, %s19
      %p16 = scmp.ge.s32.totalorder %s15, 4
      %s23 = sphi 0, %s23
      %s25 = sphi 0, %s23
      %s26 = sphi 0, %s25
      %s40 = sphi 0, %s26
      %s46 = sphi 0, %s48
      %s49 = sphi 0, %s46
      %s50 = sphi 0, %s49
      %s66 = sphi 0, %s50
      %s72 = sphi 0, %s74
      %s75 = sphi 0, %s72
      %s76 = sphi 0, %s75
      %s92 = sphi 0, %s76
    $region4: #{tpu_custom_call.1} parent=1 // loop_header_branch
      %18 = sbr.rel (%p16) target = $region8
    $region5: #{tpu_custom_call.1} parent=1 // loop_body
      %s20 = ssub.s32 %s15, 1
      %s21 = ssub.s32 %s15, 2
      %s22 = sadd.s32 %s15, 1
      %s24 = sadd.s32 %s23, 1
      %p27 = scmp.eq.s32.totalorder %s15, 1
      %p28 = scmp.ne.s32.totalorder %s23, %s25
      %p29 = scmp.eq.s32.totalorder %s15, 0
      %p30 = por %p28, %p29
      %p31 = scmp.ne.s32.totalorder %s23, %s25
      %p32 = scmp.eq.s32.totalorder %s20, 1
      %p33 = por %p31, %p32
      %p34 = scmp.ne.s32.totalorder %s25, %s26
      %p35 = scmp.eq.s32.totalorder %s20, 0
      %p36 = por %p34, %p35
      %p37 = scmp.ne.s32.totalorder %s25, %s26
      %p38 = scmp.eq.s32.totalorder %s21, 1
      %p39 = por %p37, %p38
      %p41 = scmp.ne.s32.totalorder %s26, %s40
      %p42 = scmp.eq.s32.totalorder %s21, 0
      %p43 = por %p41, %p42
      %s44 = ssub.s32 %s15, %s22
      %p45 = scmp.eq.s32.totalorder %s44, 0
      %s47 = sadd.s32 %s46, 1
      %s48 = scalar_select %p45, %s46, %s47
      %p51 = pneg %p45
      %p52 = scmp.eq.s32.totalorder %s15, 1
      %p53 = por %p51, %p52
      %p54 = scmp.ne.s32.totalorder %s46, %s49
      %p55 = scmp.eq.s32.totalorder %s15, 0
      %p56 = por %p54, %p55
      %p57 = scmp.ne.s32.totalorder %s46, %s49
      %p58 = scmp.eq.s32.totalorder %s20, 1
      %p59 = por %p57, %p58
      %p60 = scmp.ne.s32.totalorder %s49, %s50
      %p61 = scmp.eq.s32.totalorder %s20, 0
      %p62 = por %p60, %p61
      %p63 = scmp.ne.s32.totalorder %s49, %s50
      %p64 = scmp.eq.s32.totalorder %s21, 1
      %p65 = por %p63, %p64
      %p67 = scmp.ne.s32.totalorder %s50, %s66
      %p68 = scmp.eq.s32.totalorder %s21, 0
      %p69 = por %p67, %p68
      %s70 = ssub.s32 %s15, %s22
      %p71 = scmp.eq.s32.totalorder %s70, 0
      %s73 = sadd.s32 %s72, 1
      %s74 = scalar_select %p71, %s72, %s73
      %p77 = pneg %p71
      %p78 = scmp.eq.s32.totalorder %s15, 1
      %p79 = por %p77, %p78
      %p80 = scmp.ne.s32.totalorder %s72, %s75
      %p81 = scmp.eq.s32.totalorder %s15, 0
      %p82 = por %p80, %p81
      %p83 = scmp.ne.s32.totalorder %s72, %s75
      %p84 = scmp.eq.s32.totalorder %s20, 1
      %p85 = por %p83, %p84
      %p86 = scmp.ne.s32.totalorder %s75, %s76
      %p87 = scmp.eq.s32.totalorder %s20, 0
      %p88 = por %p86, %p87
      %p89 = scmp.ne.s32.totalorder %s75, %s76
      %p90 = scmp.eq.s32.totalorder %s21, 1
      %p91 = por %p89, %p90
      %p93 = scmp.ne.s32.totalorder %s76, %s92
      %p94 = scmp.eq.s32.totalorder %s21, 0
      %p95 = por %p93, %p94
      %p96 = scmp.le.s32.totalorder 1, %s15
      %p97 = scmp.lt.s32.totalorder %s15, 3
      %p98 = pnand %p96, %p97
      %p99 = pneg %p98
      // Predicated region
      $region9: #{tpu_custom_call.1} parent=5 // pred_check
        _
      $region10: #{tpu_custom_call.1} parent=5 // pred_check_branch
        %101 = sbr.rel (%p98) target = $region12
      $region11: #{tpu_custom_call.1} parent=5 // pred_region
        %s102 = ssub.s32 %s15, 1
        // Predicated region
        $region13: #{tpu_custom_call.1} parent=11 // pred_check
          %p103 = pneg %p36
        $region14: #{tpu_custom_call.1} parent=11 // pred_check_branch
          %105 = sbr.rel (%p103) target = $region16
        $region15: #{tpu_custom_call.1} parent=11 // pred_region
          %s107 = ssub.s32 16, 16
          %108 = vsyncadd [#allocation6], %s107
          %111 = dma.hbm_to_smem %s0, 16, [#allocation3], [#allocation6]
        $region16: #{tpu_custom_call.1} parent=11 // pred_fallthru
          _
      $region12: #{tpu_custom_call.1} parent=5 // pred_fallthru
        _
      %p112 = scmp.lt.s32.totalorder %s15, 2
      // Predicated region
      $region17: #{tpu_custom_call.1} parent=5 // pred_check
        %p113 = pneg %p112
      $region18: #{tpu_custom_call.1} parent=5 // pred_check_branch
        %115 = sbr.rel (%p113) target = $region20
      $region19: #{tpu_custom_call.1} parent=5 // pred_region
        // Predicated region
        $region21: #{tpu_custom_call.1} parent=19 // pred_check
          %p116 = pneg %p56
        $region22: #{tpu_custom_call.1} parent=19 // pred_check_branch
          %118 = sbr.rel (%p116) target = $region24
        $region23: #{tpu_custom_call.1} parent=19 // pred_region
          %s119 = sand.u32 %s46, 1
          %s120 = scalar_lea.sflag [#allocation4], %s119
          %s121 = sand.u32 %s46, 1
          %s122 = smul.addr %s121, 8
          %s123 = scalar_lea.vmem [#allocation7], %s122
          %s125 = ssub.s32 128, 128
          %126 = vsyncadd %s120, %s125
          %s127 = smul.addr %s15, 2
          %s128 = smul.addr %s127, 64
          %s129 = scalar_lea.hbm %s1, %s128
          %s131 = sshll.u32 %s123, 4
          %s132 = int_to_ptr.vmem [resolvable:$true] %s131
          %134 = dma.hbm_to_vmem [thread:$0]  %s129, 128, %s132, %s120
        $region24: #{tpu_custom_call.1} parent=19 // pred_fallthru
          _
      $region20: #{tpu_custom_call.1} parent=5 // pred_fallthru
        _
      %p135 = scmp.le.s32.totalorder 1, %s15
      %p136 = scmp.lt.s32.totalorder %s15, 3
      %p137 = pnand %p135, %p136
      %p138 = pneg %p137
      // Predicated region
      $region25: #{tpu_custom_call.1} parent=5 // pred_check
        _
      $region26: #{tpu_custom_call.1} parent=5 // pred_check_branch
        %140 = sbr.rel (%p137) target = $region28
      $region27: #{tpu_custom_call.1} parent=5 // pred_region
        %s141 = ssub.s32 %s15, 1
        // Predicated region
        $region29: #{tpu_custom_call.1} parent=27 // pred_check
          %p142 = pneg %p36
        $region30: #{tpu_custom_call.1} parent=27 // pred_check_branch
          %144 = sbr.rel (%p142) target = $region32
        $region31: #{tpu_custom_call.1} parent=27 // pred_region
          %145 = dma.done [#allocation6], 16
        $region32: #{tpu_custom_call.1} parent=27 // pred_fallthru
          _
        %s146 = sand.u32 %s49, 1
        %s147 = scalar_lea.sflag [#allocation4], %s146
        %s148 = sand.u32 %s49, 1
        %s149 = smul.addr %s148, 8
        %s150 = scalar_lea.vmem [#allocation7], %s149
        // Predicated region
        $region33: #{tpu_custom_call.1} parent=27 // pred_check
          %p151 = pneg %p62
        $region34: #{tpu_custom_call.1} parent=27 // pred_check_branch
          %153 = sbr.rel (%p151) target = $region36
        $region35: #{tpu_custom_call.1} parent=27 // pred_region
          %154 = dma.done %s147, 128
        $region36: #{tpu_custom_call.1} parent=27 // pred_fallthru
          _
        %155 = sfence
        %p156 = pneg %p36
        %p157 = pneg %p33
        %s158 = sand.u32 %s49, 1
        %s159 = scalar_lea.sflag [#allocation4], %s158
        %s160 = sand.u32 %s49, 1
        %s161 = smul.addr %s160, 8
        %s162 = scalar_lea.vmem [#allocation7], %s161
        %p163 = pneg %p62
        %p164 = pneg %p59
        %p165 = pneg %p88
        %p166 = pneg %p85
        %s167 = sand.u32 %s75, 1
        %s168 = scalar_lea.sflag [#allocation5], %s167
        %s169 = sand.u32 %s75, 1
        %s170 = smul.addr %s169, 8
        %s171 = scalar_lea.vmem [#allocation8], %s170
        %v172 = vld [vmem:[%s150] sm:$0xf]
        %v173 = vadd.f32 %v172, 0.0
        %v174 = vld [vmem:[%s150 + $0x4] sm:$0xf]
        %v175 = vadd.f32 %v173, %v174
        %vm176 = vcmask 1043456
        %v177 = vsel %vm176, %v175, 0.0
        %178 = vadd.xlane.f32.xlu0 %v177
        %v179 = vpop.xlane.xlu0 %178
        %v180 = vmul.f32 %v179, 0.00390625
        %s181 = sld [smem:[#allocation3]]
        %s182 = sld [smem:[#allocation3 + $0x1]]
        %s183 = sld [smem:[#allocation3 + $0x2]]
        %vm184 = vcmask 40960
        %185 = vst.msk [vmem:[#allocation2] sm:$0x1] %vm184, 0.0
        %v187 = vlaneseq
        %v188 = vand.u32 %v187, 127
        %v189 = vadd.s32 %v188, 4294967295
        %v190 = vlaneseq
        %v191 = vshrl.u32 %v190, 7
        %v192 = vsub.s32 %v189, %v191
        %v193 = vrot.slane %v180, %v192
        %vm195 = vcmask 32776
        %196 = vst.msk [vmem:[#allocation2] sm:$0x1] %vm195, %v193
        %v197 = vld [vmem:[#allocation2] sm:$0x1]
        %v198 = vstv %s181
        %v199 = vmul.f32 %v198, %v197
        %v200 = vstv %s182
        %v201 = vmul.f32 %v200, %v197
        %203 = vrot.lane.b32.xlu0 %v201, 127
        %v204 = vpop.permute.xlu0 %203
        %v206 = vadd.f32 %v199, %v204
        %v207 = vstv %s183
        %v208 = vmul.f32 %v207, %v197
        %210 = vrot.lane.b32.xlu0 %v208, 126
        %v211 = vpop.permute.xlu0 %210
        %v213 = vadd.f32 %v206, %v211
        %v214 = vxor.u32 %v213, 2147483648
        %v215 = vmul.f32 %v214, 1.442695
        %v216 = vpow.pop %v215
        %v217 = vadd.f32 %v216, 1.0
        %v218 = vrcp.pop %v217
        %v219 = vmul.f32 1.0, %v218
        %v220 = vlaneseq
        %v221 = vshrl.u32 %v220, 7
        %v222 = vsub.s32 0, %v221
        %v223 = vrot.slane %v219, %v222
        %225 = vbcast.lane.b32.xlu0 %v223, 256
        %v226 = vpop.permute.xlu0 %225
        %v227 = vld [vmem:[%s150] sm:$0xff]
        %v230 = vunpack.c.l.s4 839922192
        %v231 = vunpack.c.0.s8 %v230
        %v232 = vlaneseq
        %v233 = vshrl.u32 %v232, 7
        %v234 = vsub.s32 %v231, %v233
        %v235 = vrot.slane %v226, %v234
        %v237 = vmul.f32 %v227, %v235
        %238 = vst [vmem:[%s171] sm:$0xff] %v237
        %s239 = sand.u32 %s75, 1
        %s240 = scalar_lea.sflag [#allocation5], %s239
        %s241 = sand.u32 %s75, 1
        %s242 = smul.addr %s241, 8
        %s243 = scalar_lea.vmem [#allocation8], %s242
        // Predicated region
        $region37: #{tpu_custom_call.1} parent=27 // pred_check
          %p244 = pneg %p85
        $region38: #{tpu_custom_call.1} parent=27 // pred_check_branch
          %246 = sbr.rel (%p244) target = $region40
        $region39: #{tpu_custom_call.1} parent=27 // pred_region
          %s248 = ssub.s32 128, 128
          %249 = vsyncadd %s240, %s248
          %s250 = smul.addr %s20, 2
          %s251 = smul.addr %s250, 64
          %s252 = scalar_lea.hbm %s2, %s251
          %s254 = sshll.u32 %s243, 4
          %s255 = int_to_ptr.vmem [resolvable:$true] %s254
          %257 = dma.vmem_to_hbm [thread:$0]  %s255, 128, %s252, %s240
        $region40: #{tpu_custom_call.1} parent=27 // pred_fallthru
          _
      $region28: #{tpu_custom_call.1} parent=5 // pred_fallthru
        _
      %p258 = scmp.le.s32.totalorder 2, %s15
      // Predicated region
      $region41: #{tpu_custom_call.1} parent=5 // pred_check
        %p259 = pneg %p258
      $region42: #{tpu_custom_call.1} parent=5 // pred_check_branch
        %261 = sbr.rel (%p259) target = $region44
      $region43: #{tpu_custom_call.1} parent=5 // pred_region
        %s262 = ssub.s32 %s15, 2
        // Predicated region
        $region45: #{tpu_custom_call.1} parent=43 // pred_check
          %p263 = pneg %p91
        $region46: #{tpu_custom_call.1} parent=43 // pred_check_branch
          %265 = sbr.rel (%p263) target = $region48
        $region47: #{tpu_custom_call.1} parent=43 // pred_region
          %s266 = sand.u32 %s76, 1
          %s267 = scalar_lea.sflag [#allocation5], %s266
          %s268 = sand.u32 %s76, 1
          %s269 = smul.addr %s268, 8
          %s270 = scalar_lea.vmem [#allocation8], %s269
          %271 = dma.done %s267, 128
        $region48: #{tpu_custom_call.1} parent=43 // pred_fallthru
          _
      $region44: #{tpu_custom_call.1} parent=5 // pred_fallthru
        _
    $region6: #{tpu_custom_call.1} parent=1 // loop_footer
      %s19 = sadd.s32 1, %s15
    $region7: #{tpu_custom_call.1} parent=1 // loop_footer_branch
      %14 = sbr.rel target = $region3
    $region8: #{tpu_custom_call.1} parent=1 // loop_exit
      _
    %272 = vsyncpa [#allocation4], 1
    %s273 = scalar_lea.sflag [#allocation4], 1
    %274 = vsyncpa %s273, 1
    %275 = vsyncpa [#allocation5], 1
    %s276 = scalar_lea.sflag [#allocation5], 1
    %277 = vsyncpa %s276, 1
    %278 = vsyncpa [#allocation6], 1
    %s279 = scalar_lea.sflag [#allocation6], 1
    %280 = vsyncpa %s279, 1

</llo_original>
